<compile_context>
chip_gen: v7x
topology: tpu7x:2x2x1
jax: 0.10.0
libtpu: 0.0.40
codegen_flags: <defaults>
</compile_context>

<pallas_src>
import functools
import math
from typing import Dict, List, Tuple

import jax
import jax.numpy as jnp
from jax.experimental import pallas as pl
from jax.experimental.pallas import tpu as pltpu


def _round_up(x: int, m: int) -> int:
    return ((x + m - 1) // m) * m


# ---------------------------------------------------------------------------
# Fast path: VMEM-resident table, lane-dense (B, F*D) output.
# ---------------------------------------------------------------------------

def _gather_vmem_kernel(idx_ref, table_ref, out_ref, *, num_feats: int, d: int):
    """Gather F embedding rows per sample from a VMEM-resident table.

    idx_ref  : [B_pad * F] int32 in SMEM (scalar prefetch), row-major (b, f).
    table_ref: [V, D] whole embedding table in VMEM (copied from HBM once).
    out_ref  : [tile_b, F * D] lane-dense pipelined output block.
    """
    tile_b = out_ref.shape[0]
    base = pl.program_id(0) * (tile_b * num_feats)

    @pl.loop(0, tile_b)
    def _sample(b):
        for f in range(num_feats):               # static unroll (F is small)
            row = idx_ref[base + b * num_feats + f]
            out_ref[pl.ds(b, 1), pl.ds(f * d, d)] = table_ref[pl.ds(row, 1), :]


def embedding_gather_vmem(table: jax.Array, idx_bf: jax.Array,
                          *, b_tile: int = 512,
                          vmem_limit_bytes: int = 32 * 1024 * 1024) -> jax.Array:
    """out[b, f*D:(f+1)*D] = table[idx_bf[b, f], :]   (lane-dense [B, F*D])."""
    b, f = idx_bf.shape
    v, d = table.shape
    out_w = f * d
    itemsize = jnp.dtype(table.dtype).itemsize

    # Keep the double-buffered output block modest; multiple of 8 sublanes.
    max_rows = max(8, (2 * 1024 * 1024) // max(out_w * itemsize, 1))
    b_tile = max(8, min(b_tile, (max_rows // 8) * 8))

    if b <= b_tile:
        tile_b, b_pad = b, b      # single block == full array: no pad, no slice
    else:
        tile_b = b_tile
        b_pad = _round_up(b, tile_b)

    idx_flat = idx_bf.reshape(-1).astype(jnp.int32)
    if b_pad != b:
        # Padded tail samples gather row 0 (harmless); sliced off below.
        idx_flat = jnp.zeros((b_pad * f,), jnp.int32).at[: b * f].set(idx_flat)

    bytes_accessed = v * d * itemsize + b_pad * f * 4 + b_pad * out_w * itemsize
    out = pl.pallas_call(
        functools.partial(_gather_vmem_kernel, num_feats=f, d=d),
        out_shape=jax.ShapeDtypeStruct((b_pad, out_w), table.dtype),
        grid_spec=pltpu.PrefetchScalarGridSpec(
            num_scalar_prefetch=1,
            grid=(b_pad // tile_b,),
            # Whole table as one VMEM block; constant index_map => copied once.
            in_specs=[pl.BlockSpec((v, d), lambda i, idx: (0, 0))],
            out_specs=pl.BlockSpec((tile_b, out_w), lambda i, idx: (i, 0)),
        ),
        compiler_params=pltpu.CompilerParams(
            dimension_semantics=("parallel",),
            vmem_limit_bytes=vmem_limit_bytes),
        cost_estimate=pl.CostEstimate(flops=0, transcendentals=0,
                                      bytes_accessed=bytes_accessed),
    )(idx_flat, table)
    return out if b_pad == b else out[:b]


# ---------------------------------------------------------------------------
# Fallback path: blocked HBM DMA-relay row gather (table stays in HBM).
# ---------------------------------------------------------------------------

def _gather_hbm_kernel(idx_ref, table_hbm, out_ref, sems, *, nsem: int):
    """Gather `tile` rows of `table_hbm` into the current output block.

    idx_ref   : [n_pad] int32 in SMEM (scalar prefetch) -- global row ids.
    table_hbm : [V, D] raw HBM ref (memory_space=pl.ANY).
    out_ref   : [tile, D] pipelined VMEM output block.
    sems      : [nsem] DMA semaphores, round-robined over in-flight row copies.
    """
    tile = out_ref.shape[0]
    base = pl.program_id(0) * tile
    rows_per_sem = tile // nsem          # wrapper guarantees tile % nsem == 0

    # Phase 1: fire all row DMAs for this tile; they stay in flight together.
    @pl.loop(0, tile)
    def _issue(r):
        row = idx_ref[base + r]
        pltpu.make_async_copy(
            table_hbm.at[pl.ds(row, 1), :],
            out_ref.at[pl.ds(r, 1), :],
            sems.at[r % nsem],
        ).start()

    # Phase 2: aggregate drain -- one wait per semaphore.  Each semaphore
    # accumulated exactly `rows_per_sem` copies of (1, D); a single descriptor
    # covering (rows_per_sem, D) rows of the same dtype has the identical byte
    # count (wrapper also guarantees rows_per_sem <= V), so one .wait() fully
    # drains it.  This cuts per-step drain work from `tile` to `nsem` ops.
    for s in range(nsem):
        pltpu.make_async_copy(
            table_hbm.at[pl.ds(0, rows_per_sem), :],
            out_ref.at[pl.ds(0, rows_per_sem), :],
            sems.at[s],
        ).wait()


def embedding_gather_hbm(table: jax.Array, flat_idx: jax.Array,
                         *, tile: int = 1024, nsem: int = 8,
                         vmem_limit_bytes: int = 32 * 1024 * 1024) -> jax.Array:
    """out[i, :] = table[flat_idx[i], :]  via a blocked DMA-relay row gather."""
    n = int(flat_idx.shape[0])
    v, d = table.shape
    itemsize = jnp.dtype(table.dtype).itemsize

    q = 8 * nsem // math.gcd(8, nsem)     # tile: multiple of 8 and of nsem
    tile = min(tile, _round_up(max(n, 1), q), nsem * v)
    tile = max(q, (tile // q) * q)
    assert tile % nsem == 0 and tile % 8 == 0
    assert tile // nsem <= v              # aggregate-drain descriptor fits table

    n_pad = _round_up(max(n, 1), tile)
    idx = flat_idx.astype(jnp.int32)
    if n_pad != n:
        idx = jnp.zeros((n_pad,), jnp.int32).at[:n].set(idx)

    bytes_accessed = n_pad * (2 * d * itemsize + 4)
    out = pl.pallas_call(
        functools.partial(_gather_hbm_kernel, nsem=nsem),
        out_shape=jax.ShapeDtypeStruct((n_pad, d), table.dtype),
        grid_spec=pltpu.PrefetchScalarGridSpec(
            num_scalar_prefetch=1,
            grid=(n_pad // tile,),
            in_specs=[pl.BlockSpec(memory_space=pl.ANY)],   # table stays in HBM
            out_specs=pl.BlockSpec((tile, d), lambda i, idx_ref: (i, 0)),
            scratch_shapes=[pltpu.SemaphoreType.DMA((nsem,))],
        ),
        compiler_params=pltpu.CompilerParams(
            dimension_semantics=("parallel",),
            vmem_limit_bytes=vmem_limit_bytes),
        cost_estimate=pl.CostEstimate(flops=0, transcendentals=0,
                                      bytes_accessed=bytes_accessed),
    )(idx, table)
    return out if n_pad == n else out[:n]


# ---------------------------------------------------------------------------
# Module wrapper.
# ---------------------------------------------------------------------------

class SparseEmbeddingLayer:
    """JAX/Pallas port of the PyTorch SparseEmbeddingLayer (forward only)."""

    # Tables up to this size take the VMEM-resident fast path; double-buffered
    # table (2x) + output blocks stay well under every generation's scoped
    # VMEM limit, including v7x's 64 MiB physical / 32 MiB default.
    VMEM_TABLE_BUDGET_BYTES = 4 * 1024 * 1024

    def __init__(self, feat_and_nums: List[Tuple[str, int]], embed_dim: int,
                 key: jax.Array, param_dtype=jnp.float32):
        self.feat_and_nums = list(feat_and_nums)
        self.embed_dim = embed_dim
        self.nums = {f: n for f, n in feat_and_nums}

        # `weight_init` in the reference module is unspecified; use
        # nn.Embedding's default N(0, 1) per table.
        keys = jax.random.split(key, len(feat_and_nums))
        tables = [jax.random.normal(k, (num, embed_dim), dtype=jnp.float32)
                  for k, (_, num) in zip(keys, feat_and_nums)]
        # param_dtype=jnp.bfloat16 halves HBM traffic and VMEM footprint
        # (recommended on v7x); fp32 keeps exact parity with the reference.
        self.table = jnp.concatenate(tables, axis=0).astype(param_dtype)  # [V, D]

        self.offsets, acc = {}, 0
        for f, num in feat_and_nums:
            self.offsets[f] = acc
            acc += num

    def _global_ids(self, feats: Dict[str, jax.Array], names) -> jax.Array:
        # Out-of-range ids are clamped into each feature's vocab (torch's
        # nn.Embedding raises instead; raising is not expressible in-kernel).
        return jnp.stack(
            [jnp.clip(feats[name].astype(jnp.int32), 0, self.nums[name] - 1)
             + self.offsets[name] for name in names],
            axis=1)                                           # [B, F]

    def __call__(self, feats: Dict[str, jax.Array], axis: int = 2):
        names = list(feats.keys())
        b = feats[names[0]].shape[0]
        f = len(names)
        d = self.embed_dim
        gidx = self._global_ids(feats, names)                 # [B, F]

        table_bytes = self.table.size * jnp.dtype(self.table.dtype).itemsize
        if table_bytes <= self.VMEM_TABLE_BUDGET_BYTES:
            flat2d = embedding_gather_vmem(self.table, gidx)          # [B, F*D]
        else:
            rows = embedding_gather_hbm(self.table, gidx.reshape(-1))  # [B*F, D]
            flat2d = rows.reshape(b, f * d)

        if axis == 1:
            return flat2d.reshape(b, f, d)            # == cat(unsqueeze(1), dim=1)
        elif axis == 2:
            return flat2d                             # == cat(..., dim=-1)
        else:
            # Reference: (cat(dim=1), cat(dim=-1).squeeze(1)).
            return flat2d.reshape(b, f, d), flat2d


if __name__ == "__main__":
    key = jax.random.PRNGKey(0)
    k_params, k_u, k_i, k_c = jax.random.split(key, 4)

    feat_and_nums = [("user_id", 10), ("item_id", 20), ("cate_id", 7)]
    embed_dim = 16
    batch = 8

    layer = SparseEmbeddingLayer(feat_and_nums, embed_dim, k_params)

    feats = {
        "user_id": jax.random.randint(k_u, (batch,), 0, 10, dtype=jnp.int32),
        "item_id": jax.random.randint(k_i, (batch,), 0, 20, dtype=jnp.int32),
        "cate_id": jax.random.randint(k_c, (batch,), 0, 7, dtype=jnp.int32),
    }

    out_axis2 = layer(feats, axis=2)          # [B, F*D]  (VMEM-table fast path)
    out_axis1 = layer(feats, axis=1)          # [B, F, D]
    out_both = layer(feats, axis=0)           # (dim1_out, dim2_out)
    jax.block_until_ready((out_axis2, out_axis1, out_both))

    # Pure-JAX reference of the gather + concat semantics.
    names = list(feats.keys())
    ref_rows = [
        jnp.take(layer.table,
                 feats[n].astype(jnp.int32) + layer.offsets[n], axis=0)
        for n in names
    ]
    ref_axis1 = jnp.stack(ref_rows, axis=1)
    ref_axis2 = jnp.concatenate(ref_rows, axis=-1)

    assert out_axis1.shape == (batch, len(names), embed_dim)
    assert out_axis2.shape == (batch, len(names) * embed_dim)
    assert jnp.allclose(out_axis1, ref_axis1)
    assert jnp.allclose(out_axis2, ref_axis2)
    assert jnp.allclose(out_both[0], ref_axis1) and jnp.allclose(out_both[1], ref_axis2)

    # Also exercise the HBM DMA-relay fallback (used when the table exceeds
    # the VMEM budget) so both paths are compile- and correctness-checked.
    gidx_flat = layer._global_ids(feats, names).reshape(-1)
    rows_hbm = embedding_gather_hbm(layer.table, gidx_flat)
    jax.block_until_ready(rows_hbm)
    assert jnp.allclose(rows_hbm, jnp.take(layer.table, gidx_flat, axis=0))

    print("KERNEL_OK")
</pallas_src>

<mosaic_0001>
module attributes {stable_mosaic.version = 11 : i64} {
  func.func @_gather_vmem_kernel(%arg0: i32, %arg1: memref<24xi32, #tpu.memory_space<smem>>, %arg2: memref<37x16xf32, #tpu.memory_space<vmem>>, %arg3: memref<8x48xf32, #tpu.memory_space<vmem>>) attributes {dimension_semantics = [#tpu.dimension_semantics<parallel>], iteration_bounds = array<i64: 1>, scalar_prefetch = 1 : i64, scratch_operands = 0 : i64, tpu.core_type = #tpu.core_type<tc>, window_params = [{pipeline_mode = #tpu.pipeline_mode<synchronous>, transform_indices = @transform_0, window_bounds = array<i64: 37, 16>}, {transform_indices = @transform_1, window_bounds = array<i64: 8, 48>}]} {
    %c24_i32 = arith.constant 24 : i32
    %0 = arith.muli %arg0, %c24_i32 : i32
    %c0_i32 = arith.constant 0 : i32
    %c8_i32 = arith.constant 8 : i32
    %1 = arith.addi %c0_i32, %c8_i32 : i32
    %c1_i32 = arith.constant 1 : i32
    scf.for %arg4 = %c0_i32 to %1 step %c1_i32  : i32 {
      %c1_i32_1 = arith.constant 1 : i32
      %2 = arith.muli %arg4, %c1_i32_1 : i32
      %c0_i32_2 = arith.constant 0 : i32
      %3 = arith.addi %c0_i32_2, %2 : i32
      %c3_i32 = arith.constant 3 : i32
      %4 = arith.muli %3, %c3_i32 : i32
      %5 = arith.addi %0, %4 : i32
      %c0_i32_3 = arith.constant 0 : i32
      %6 = arith.addi %5, %c0_i32_3 : i32
      %7 = arith.index_cast %6 : i32 to index
      %8 = memref.load %arg1[%7] : memref<24xi32, #tpu.memory_space<smem>>
      %9 = arith.index_cast %8 : i32 to index
      %c0 = arith.constant 0 : index
      %10 = vector.load %arg2[%9, %c0] : memref<37x16xf32, #tpu.memory_space<vmem>>, vector<1x16xf32>
      %11 = arith.index_cast %3 : i32 to index
      %c0_4 = arith.constant 0 : index
      %12 = vector.load %arg3[%11, %c0_4] : memref<8x48xf32, #tpu.memory_space<vmem>>, vector<1x16xf32>
      tpu.vector_store %arg3[%11, %c0_4], %10 {strides = array<i32>} : memref<8x48xf32, #tpu.memory_space<vmem>>, vector<1x16xf32>,
      %c3_i32_5 = arith.constant 3 : i32
      %13 = arith.muli %3, %c3_i32_5 : i32
      %14 = arith.addi %0, %13 : i32
      %c1_i32_6 = arith.constant 1 : i32
      %15 = arith.addi %14, %c1_i32_6 : i32
      %16 = arith.index_cast %15 : i32 to index
      %17 = memref.load %arg1[%16] : memref<24xi32, #tpu.memory_space<smem>>
      %18 = arith.index_cast %17 : i32 to index
      %c0_7 = arith.constant 0 : index
      %19 = vector.load %arg2[%18, %c0_7] : memref<37x16xf32, #tpu.memory_space<vmem>>, vector<1x16xf32>
      %20 = arith.index_cast %3 : i32 to index
      %c16 = arith.constant 16 : index
      %21 = vector.load %arg3[%20, %c16] : memref<8x48xf32, #tpu.memory_space<vmem>>, vector<1x16xf32>
      tpu.vector_store %arg3[%20, %c16], %19 {strides = array<i32>} : memref<8x48xf32, #tpu.memory_space<vmem>>, vector<1x16xf32>,
      %c3_i32_8 = arith.constant 3 : i32
      %22 = arith.muli %3, %c3_i32_8 : i32
      %23 = arith.addi %0, %22 : i32
      %c2_i32 = arith.constant 2 : i32
      %24 = arith.addi %23, %c2_i32 : i32
      %25 = arith.index_cast %24 : i32 to index
      %26 = memref.load %arg1[%25] : memref<24xi32, #tpu.memory_space<smem>>
      %27 = arith.index_cast %26 : i32 to index
      %c0_9 = arith.constant 0 : index
      %28 = vector.load %arg2[%27, %c0_9] : memref<37x16xf32, #tpu.memory_space<vmem>>, vector<1x16xf32>
      %29 = arith.index_cast %3 : i32 to index
      %c32 = arith.constant 32 : index
      %30 = vector.load %arg3[%29, %c32] : memref<8x48xf32, #tpu.memory_space<vmem>>, vector<1x16xf32>
      tpu.vector_store %arg3[%29, %c32], %28 {strides = array<i32>} : memref<8x48xf32, #tpu.memory_space<vmem>>, vector<1x16xf32>,
    }
    %c8_i32_0 = arith.constant 8 : i32
    return
  }
  func.func @transform_0(%arg0: i32, %arg1: memref<24xi32, #tpu.memory_space<smem>>) -> (i32, i32) {
    %c0_i32 = arith.constant 0 : i32
    %c0_i32_0 = arith.constant 0 : i32
    %c0_i32_1 = arith.constant 0 : i32
    return %c0_i32, %c0_i32_0 : i32, i32
  }
  func.func @transform_1(%arg0: i32, %arg1: memref<24xi32, #tpu.memory_space<smem>>) -> (i32, i32) {
    %c0_i32 = arith.constant 0 : i32
    %c0_i32_0 = arith.constant 0 : i32
    return %arg0, %c0_i32 : i32, i32
  }
}

</mosaic_0001>

<llo_original>
// kernel: tpu_custom_call.1
$region0: #{tpu_custom_call.1}
  #allocation0 [shape = 'u32[]', space=smem, size = 0x4, offset = 0x4, fixed_abs, tag = 'smem constant byte address 0x4 - core index']
  #allocation1 [shape = 'u32[144,128]{1,0:T(1,128)}', space=vmem, size = 0x12000, scoped, tag = 'internal scratch']
  #allocation2 [shape = 's32[1]{0}', space=sflag, size = 0x4, scoped, tag = 'scoped memory for tpu_custom_call.1']
  #allocation3 [shape = 'u8[512]{0}', space=smem, size = 0x200, scoped, tag = 'prefetched SMEM operand 0']
  %s0 = inlined_call_operand.vmem [shape: s32[24], index: 0, kind: input, shape index: {}]
  %s1 = inlined_call_operand.vmem [shape: f32[37,16], index: 1, kind: input, shape index: {}]
  %s2 = inlined_call_operand.hbm [shape: f32[8,48], index: 2, kind: output, shape index: {}]
  %s3 = sld [smem:[#allocation0]]
  $region21: #{tpu_custom_call.1} parent=0
    _
  %s5 = ssub.s32 1, %s3
  %s6 = scalar_select 0, %s5, %s3
  %s7 = sshll.u32 %s0, 4
  %s8 = int_to_ptr.vmem [resolvable:$true] %s7
  %10 = dma.vmem_to_smem %s8, 16, [#allocation3], [#allocation2]
  %11 = dma.done [#allocation2], 16
  %12 = sfence
  $region1: #{tpu_custom_call.1} parent=0
    #allocation4 [shape = 'u8[4096]{0}', space=vmem, size = 0x1000, scoped, tag = 'output window, operand 0, single buffered']
    #allocation5 [shape = 's32[1]{0}', space=sflag, size = 0x4, scoped, tag = 'scoped memory for tpu_custom_call.1']
    %13 = vsyncpa [#allocation5], 0
    // Predicated region
    $region2: #{tpu_custom_call.1} parent=1 // pred_check
      _
    $region3: #{tpu_custom_call.1} parent=1 // pred_check_branch
      %15 = sbr.rel (0) target = $region5
    $region4: #{tpu_custom_call.1} parent=1 // pred_region
      _
    $region5: #{tpu_custom_call.1} parent=1 // pred_fallthru
      _
    %s16 = smul.u32 0, 24
    loop: start=0, step=1, limit=8
    $region6: #{tpu_custom_call.1} parent=1 // loop_pre_header
      _
    $region7: #{tpu_custom_call.1} parent=1 // loop_header
      %s18 = sphi 0, %s22
      %p19 = scmp.ge.s32.totalorder %s18, 8
    $region8: #{tpu_custom_call.1} parent=1 // loop_header_branch
      %21 = sbr.rel (%p19) target = $region12
    $region9: #{tpu_custom_call.1} parent=1 // loop_body
      %s23 = smul.u32 %s18, 3
      %s24 = sadd.s32 %s16, %s23
      %s25 = sld [smem:[#allocation3 + %s24]]
      %s26 = scalar_lea.vmem %s1, %s25
      %v27 = vld [vmem:[%s26] sm:$0x1]
      %s28 = scalar_lea.vmem [#allocation4], %s18
      %vm29 = vcmask 122880
      %30 = vst.msk [vmem:[%s28] sm:$0x1] %vm29, %v27
      %s31 = sadd.s32 %s24, 1
      %s32 = sld [smem:[#allocation3 + %s31]]
      %s33 = scalar_lea.vmem %s1, %s32
      %v34 = vld [vmem:[%s33] sm:$0x1]
      %36 = vrot.lane.b32.xlu0 %v34, 16
      %v37 = vpop.permute.xlu0 %36
      %vm39 = vcmask 254080
      %40 = vst.msk [vmem:[%s28] sm:$0x1] %vm39, %v37
      %s41 = sadd.s32 %s24, 2
      %s42 = sld [smem:[#allocation3 + %s41]]
      %s43 = scalar_lea.vmem %s1, %s42
      %v44 = vld [vmem:[%s43] sm:$0x1]
      %46 = vrot.lane.b32.xlu0 %v44, 32
      %v47 = vpop.permute.xlu0 %46
      %vm49 = vcmask 385280
      %50 = vst.msk [vmem:[%s28] sm:$0x1] %vm49, %v47
    $region10: #{tpu_custom_call.1} parent=1 // loop_footer
      %s22 = sadd.s32 1, %s18
    $region11: #{tpu_custom_call.1} parent=1 // loop_footer_branch
      %17 = sbr.rel target = $region7
    $region12: #{tpu_custom_call.1} parent=1 // loop_exit
      _
    // Predicated region
    $region13: #{tpu_custom_call.1} parent=1 // pred_check
      _
    $region14: #{tpu_custom_call.1} parent=1 // pred_check_branch
      %52 = sbr.rel (0) target = $region16
    $region15: #{tpu_custom_call.1} parent=1 // pred_region
      %s54 = ssub.s32 128, 128
      %55 = vsyncadd [#allocation5], %s54
      %s57 = sshll.u32 [#allocation4], 4
      %s58 = int_to_ptr.vmem [resolvable:$true] %s57
      %60 = dma.vmem_to_hbm [thread:$0]  %s58, 128, %s2, [#allocation5]
    $region16: #{tpu_custom_call.1} parent=1 // pred_fallthru
      _
    // Predicated region
    $region17: #{tpu_custom_call.1} parent=1 // pred_check
      _
    $region18: #{tpu_custom_call.1} parent=1 // pred_check_branch
      %62 = sbr.rel (0) target = $region20
    $region19: #{tpu_custom_call.1} parent=1 // pred_region
      %63 = dma.done [#allocation5], 128
    $region20: #{tpu_custom_call.1} parent=1 // pred_fallthru
      _
    %64 = vsyncpa [#allocation5], 1

</llo_original>
